<compile_context>
chip_gen: v7x
topology: tpu7x:2x2x1
jax: 0.10.0
libtpu: 0.0.40
codegen_flags: <defaults>
</compile_context>

<pallas_src>
import jax
import jax.numpy as jnp
from jax.experimental import pallas as pl
from jax.experimental.pallas import tpu as pltpu

LANES = 128       # lane width (last dim)
MAX_TR = 1024     # rows per grid step: 1024*128*4B = 512 KiB per input block
NUM_CORES = 2     # leading "parallel" grid axis (megacore split on v7x)

ALPHA = 0.8
GAMMA = 2
SMOOTH = 1e-05


def _round_up(a, b):
    return ((a + b - 1) // b) * b


def _compound_sums_kernel(x_ref, y_ref, out_ref):
    """Accumulate per-lane/sublane partial sums for the compound loss.

    x_ref, y_ref : (TR, LANES) f32 tiles (zero-padded tail; no masking here —
                   the wrapper corrects the padding contribution analytically).
    out_ref      : (32, LANES) f32 resident accumulator (one per core slot):
                     rows  0..7  : BCE-with-logits terms on sigmoid(x)
                     rows  8..15 : sigmoid(x) * y   (dice intersection)
                     rows 16..23 : sigmoid(x)       (dice denominator)
                     rows 24..31 : y                (dice denominator)
    """
    step = pl.program_id(1)

    @pl.when(step == 0)
    def _():
        out_ref[...] = jnp.zeros_like(out_ref)

    x = x_ref[...]
    y = y_ref[...]

    s = jax.nn.sigmoid(x)
    # torch.nn.BCEWithLogitsLoss applied to s (the module sigmoid's twice):
    #   max(s,0) - s*y + log1p(exp(-|s|))  ==  s*(1-y) + log1p(exp(-s))
    # since s = sigmoid(x) is strictly in (0, 1).
    bce = s * (1.0 - y) + jnp.log1p(jnp.exp(-s))
    prod = s * y

    tr = x.shape[0]

    def fold(v):
        # (TR, LANES) -> (8, LANES): groups of 8 rows align with (8,128) vreg
        # tiles, so this is plain vreg adds — no cross-lane/sublane shuffles.
        return jnp.sum(v.reshape(tr // 8, 8, LANES), axis=0)

    out_ref[0:8, :] += fold(bce)
    out_ref[8:16, :] += fold(prod)
    out_ref[16:24, :] += fold(s)
    out_ref[24:32, :] += fold(y)


def compound_loss(logits, labels):
    """JAX/Pallas equivalent of CompoundLoss.forward(logits, labels)."""
    n = logits.size
    x = jnp.asarray(logits, jnp.float32).reshape(-1)
    y = jnp.asarray(labels, jnp.float32).reshape(-1)

    rows = pl.cdiv(n, LANES)
    tr = min(MAX_TR, _round_up(max(pl.cdiv(rows, NUM_CORES), 1), 8))
    rows_padded = _round_up(rows, tr * NUM_CORES)
    steps_per_core = rows_padded // (tr * NUM_CORES)
    pad = rows_padded * LANES - n

    x = jnp.pad(x, (0, pad)).reshape(rows_padded, LANES)
    y = jnp.pad(y, (0, pad)).reshape(rows_padded, LANES)

    def in_map(c, i):
        return (c * steps_per_core + i, 0)

    partials = pl.pallas_call(
        _compound_sums_kernel,
        out_shape=jax.ShapeDtypeStruct((NUM_CORES, 32, LANES), jnp.float32),
        grid=(NUM_CORES, steps_per_core),
        in_specs=[
            pl.BlockSpec((tr, LANES), in_map),
            pl.BlockSpec((tr, LANES), in_map),
        ],
        out_specs=pl.BlockSpec((None, 32, LANES), lambda c, i: (c, 0, 0)),
        compiler_params=pltpu.CompilerParams(
            dimension_semantics=("parallel", "arbitrary"),
        ),
    )(x, y)

    sums = jnp.sum(partials.reshape(NUM_CORES, 4, 8, LANES), axis=(0, 2, 3))
    bce_sum, intersection, s_sum, y_sum = sums[0], sums[1], sums[2], sums[3]

    # Analytic padding correction: each pad element has x = 0, y = 0, so it
    # contributed sigmoid(0)=0.5 to s_sum and 0.5 + log1p(exp(-0.5)) to
    # bce_sum (and nothing to intersection / y_sum). Computed with the same
    # f32 primitives as the kernel.
    s0 = jnp.float32(0.5)
    pad_bce = s0 + jnp.log1p(jnp.exp(-s0))
    pad_f = jnp.float32(pad)
    bce_sum = bce_sum - pad_f * pad_bce
    s_sum = s_sum - pad_f * s0

    bce_loss = bce_sum / jnp.float32(n)          # BCEWithLogitsLoss mean reduction
    focal_loss = ALPHA * (1.0 - jnp.exp(-bce_loss)) ** GAMMA * bce_loss

    num = 2.0 * intersection + SMOOTH
    den = s_sum + y_sum + SMOOTH
    dice = 1.0 - num / den

    return bce_loss + dice + focal_loss


def _reference_loss(logits, labels):
    """Pure-JAX reference matching the PyTorch module semantics."""
    x = jax.nn.sigmoid(jnp.asarray(logits, jnp.float32).reshape(-1))
    y = jnp.asarray(labels, jnp.float32).reshape(-1)
    bce_elem = jnp.maximum(x, 0.0) - x * y + jnp.log1p(jnp.exp(-jnp.abs(x)))
    bce_loss = jnp.mean(bce_elem)
    focal = ALPHA * (1.0 - jnp.exp(-bce_loss)) ** GAMMA * bce_loss
    inter = jnp.sum(x * y)
    dice = 1.0 - (2.0 * inter + SMOOTH) / (jnp.sum(x) + jnp.sum(y) + SMOOTH)
    return bce_loss + dice + focal


if __name__ == "__main__":
    key = jax.random.PRNGKey(0)
    k1, k2 = jax.random.split(key)

    # Small segmentation-style shapes: NCHW (batch=2, channels=4, 16x16).
    logits = jax.random.normal(k1, (2, 4, 16, 16), dtype=jnp.float32)
    labels = (jax.random.uniform(k2, (2, 4, 16, 16)) > 0.5).astype(jnp.float32)

    loss = jax.block_until_ready(compound_loss(logits, labels))
    ref = jax.block_until_ready(_reference_loss(logits, labels))
    assert jnp.allclose(loss, ref, rtol=1e-5, atol=1e-5), (loss, ref)

    print("KERNEL_OK")
</pallas_src>

<mosaic_0001>
module attributes {stable_mosaic.version = 11 : i64} {
  func.func @_compound_sums_kernel(%arg0: i32, %arg1: i32, %arg2: memref<8x128xf32, #tpu.memory_space<vmem>>, %arg3: memref<8x128xf32, #tpu.memory_space<vmem>>, %arg4: memref<1x32x128xf32, #tpu.memory_space<vmem>>) attributes {dimension_semantics = [#tpu.dimension_semantics<parallel>, #tpu.dimension_semantics<arbitrary>], iteration_bounds = array<i64: 2, 1>, scalar_prefetch = 0 : i64, scratch_operands = 0 : i64, tpu.core_type = #tpu.core_type<tc>, window_params = [{transform_indices = @transform_0, window_bounds = array<i64: 8, 128>}, {transform_indices = @transform_1, window_bounds = array<i64: 8, 128>}, {transform_indices = @transform_2, window_bounds = array<i64: 1, 32, 128>}]} {
    %c0_i32 = arith.constant 0 : i32
    %0 = arith.cmpi eq, %arg1, %c0_i32 : i32
    %1 = arith.extui %0 : i1 to i32
    %c0_i32_0 = arith.constant 0 : i32
    %2 = arith.cmpi ne, %1, %c0_i32_0 : i32
    scf.if %2 {
      %cst_31 = arith.constant 0.000000e+00 : f32
      %51 = vector.broadcast %cst_31 : f32 to vector<32x128xf32>
      %c0_32 = arith.constant 0 : index
      %c0_33 = arith.constant 0 : index
      %c0_34 = arith.constant 0 : index
      %52 = vector.load %arg4[%c0_32, %c0_33, %c0_34] : memref<1x32x128xf32, #tpu.memory_space<vmem>>, vector<1x32x128xf32>
      %53 = vector.shape_cast %52 : vector<1x32x128xf32> to vector<32x128xf32>
      %54 = vector.shape_cast %51 : vector<32x128xf32> to vector<1x32x128xf32>
      tpu.vector_store %arg4[%c0_32, %c0_33, %c0_34], %54 {strides = array<i32>} : memref<1x32x128xf32, #tpu.memory_space<vmem>>, vector<1x32x128xf32>,
    } else {
    }
    %c0 = arith.constant 0 : index
    %c0_1 = arith.constant 0 : index
    %3 = vector.load %arg2[%c0, %c0_1] : memref<8x128xf32, #tpu.memory_space<vmem>>, vector<8x128xf32>
    %c0_2 = arith.constant 0 : index
    %c0_3 = arith.constant 0 : index
    %4 = vector.load %arg3[%c0_2, %c0_3] : memref<8x128xf32, #tpu.memory_space<vmem>>, vector<8x128xf32>
    %5 = arith.negf %3 : vector<8x128xf32>
    %6 = math.exp %5 : vector<8x128xf32>
    %cst = arith.constant 1.000000e+00 : f32
    %7 = vector.broadcast %cst : f32 to vector<8x128xf32>
    %8 = arith.addf %7, %6 : vector<8x128xf32>
    %9 = arith.divf %7, %8 : vector<8x128xf32>
    %cst_4 = arith.constant 1.000000e+00 : f32
    %10 = vector.broadcast %cst_4 : f32 to vector<8x128xf32>
    %11 = arith.subf %10, %4 : vector<8x128xf32>
    %12 = arith.mulf %9, %11 : vector<8x128xf32>
    %cst_5 = arith.constant 0.000000e+00 : f32
    %13 = vector.broadcast %cst_5 : f32 to vector<8x128xf32>
    %14 = arith.subf %13, %9 : vector<8x128xf32>
    %15 = math.exp %14 : vector<8x128xf32>
    %16 = math.log1p %15 : vector<8x128xf32>
    %17 = arith.addf %12, %16 : vector<8x128xf32>
    %18 = arith.mulf %9, %4 : vector<8x128xf32>
    %c0_6 = arith.constant 0 : index
    %c0_7 = arith.constant 0 : index
    %c0_8 = arith.constant 0 : index
    %19 = vector.load %arg4[%c0_6, %c0_7, %c0_8] : memref<1x32x128xf32, #tpu.memory_space<vmem>>, vector<1x8x128xf32>
    %20 = vector.shape_cast %19 : vector<1x8x128xf32> to vector<8x128xf32>
    %21 = vector.shape_cast %17 : vector<8x128xf32> to vector<1x8x128xf32>
    %cst_9 = arith.constant dense<0.000000e+00> : vector<8x128xf32>
    %22 = vector.multi_reduction <add>, %21, %cst_9 [0] : vector<1x8x128xf32> to vector<8x128xf32>
    %23 = arith.addf %20, %22 : vector<8x128xf32>
    %c0_10 = arith.constant 0 : index
    %c0_11 = arith.constant 0 : index
    %c0_12 = arith.constant 0 : index
    %24 = vector.load %arg4[%c0_10, %c0_11, %c0_12] : memref<1x32x128xf32, #tpu.memory_space<vmem>>, vector<1x8x128xf32>
    %25 = vector.shape_cast %24 : vector<1x8x128xf32> to vector<8x128xf32>
    %26 = vector.shape_cast %23 : vector<8x128xf32> to vector<1x8x128xf32>
    tpu.vector_store %arg4[%c0_10, %c0_11, %c0_12], %26 {strides = array<i32>} : memref<1x32x128xf32, #tpu.memory_space<vmem>>, vector<1x8x128xf32>,
    %c0_13 = arith.constant 0 : index
    %c8 = arith.constant 8 : index
    %c0_14 = arith.constant 0 : index
    %27 = vector.load %arg4[%c0_13, %c8, %c0_14] : memref<1x32x128xf32, #tpu.memory_space<vmem>>, vector<1x8x128xf32>
    %28 = vector.shape_cast %27 : vector<1x8x128xf32> to vector<8x128xf32>
    %29 = vector.shape_cast %18 : vector<8x128xf32> to vector<1x8x128xf32>
    %cst_15 = arith.constant dense<0.000000e+00> : vector<8x128xf32>
    %30 = vector.multi_reduction <add>, %29, %cst_15 [0] : vector<1x8x128xf32> to vector<8x128xf32>
    %31 = arith.addf %28, %30 : vector<8x128xf32>
    %c0_16 = arith.constant 0 : index
    %c8_17 = arith.constant 8 : index
    %c0_18 = arith.constant 0 : index
    %32 = vector.load %arg4[%c0_16, %c8_17, %c0_18] : memref<1x32x128xf32, #tpu.memory_space<vmem>>, vector<1x8x128xf32>
    %33 = vector.shape_cast %32 : vector<1x8x128xf32> to vector<8x128xf32>
    %34 = vector.shape_cast %31 : vector<8x128xf32> to vector<1x8x128xf32>
    tpu.vector_store %arg4[%c0_16, %c8_17, %c0_18], %34 {strides = array<i32>} : memref<1x32x128xf32, #tpu.memory_space<vmem>>, vector<1x8x128xf32>,
    %c0_19 = arith.constant 0 : index
    %c16 = arith.constant 16 : index
    %c0_20 = arith.constant 0 : index
    %35 = vector.load %arg4[%c0_19, %c16, %c0_20] : memref<1x32x128xf32, #tpu.memory_space<vmem>>, vector<1x8x128xf32>
    %36 = vector.shape_cast %35 : vector<1x8x128xf32> to vector<8x128xf32>
    %37 = vector.shape_cast %9 : vector<8x128xf32> to vector<1x8x128xf32>
    %cst_21 = arith.constant dense<0.000000e+00> : vector<8x128xf32>
    %38 = vector.multi_reduction <add>, %37, %cst_21 [0] : vector<1x8x128xf32> to vector<8x128xf32>
    %39 = arith.addf %36, %38 : vector<8x128xf32>
    %c0_22 = arith.constant 0 : index
    %c16_23 = arith.constant 16 : index
    %c0_24 = arith.constant 0 : index
    %40 = vector.load %arg4[%c0_22, %c16_23, %c0_24] : memref<1x32x128xf32, #tpu.memory_space<vmem>>, vector<1x8x128xf32>
    %41 = vector.shape_cast %40 : vector<1x8x128xf32> to vector<8x128xf32>
    %42 = vector.shape_cast %39 : vector<8x128xf32> to vector<1x8x128xf32>
    tpu.vector_store %arg4[%c0_22, %c16_23, %c0_24], %42 {strides = array<i32>} : memref<1x32x128xf32, #tpu.memory_space<vmem>>, vector<1x8x128xf32>,
    %c0_25 = arith.constant 0 : index
    %c24 = arith.constant 24 : index
    %c0_26 = arith.constant 0 : index
    %43 = vector.load %arg4[%c0_25, %c24, %c0_26] : memref<1x32x128xf32, #tpu.memory_space<vmem>>, vector<1x8x128xf32>
    %44 = vector.shape_cast %43 : vector<1x8x128xf32> to vector<8x128xf32>
    %45 = vector.shape_cast %4 : vector<8x128xf32> to vector<1x8x128xf32>
    %cst_27 = arith.constant dense<0.000000e+00> : vector<8x128xf32>
    %46 = vector.multi_reduction <add>, %45, %cst_27 [0] : vector<1x8x128xf32> to vector<8x128xf32>
    %47 = arith.addf %44, %46 : vector<8x128xf32>
    %c0_28 = arith.constant 0 : index
    %c24_29 = arith.constant 24 : index
    %c0_30 = arith.constant 0 : index
    %48 = vector.load %arg4[%c0_28, %c24_29, %c0_30] : memref<1x32x128xf32, #tpu.memory_space<vmem>>, vector<1x8x128xf32>
    %49 = vector.shape_cast %48 : vector<1x8x128xf32> to vector<8x128xf32>
    %50 = vector.shape_cast %47 : vector<8x128xf32> to vector<1x8x128xf32>
    tpu.vector_store %arg4[%c0_28, %c24_29, %c0_30], %50 {strides = array<i32>} : memref<1x32x128xf32, #tpu.memory_space<vmem>>, vector<1x8x128xf32>,
    return
  }
  func.func @transform_0(%arg0: i32, %arg1: i32) -> (i32, i32) {
    %c1_i32 = arith.constant 1 : i32
    %0 = arith.muli %arg0, %c1_i32 : i32
    %1 = arith.addi %0, %arg1 : i32
    %c0_i32 = arith.constant 0 : i32
    %c0_i32_0 = arith.constant 0 : i32
    return %1, %c0_i32 : i32, i32
  }
  func.func @transform_1(%arg0: i32, %arg1: i32) -> (i32, i32) {
    %c1_i32 = arith.constant 1 : i32
    %0 = arith.muli %arg0, %c1_i32 : i32
    %1 = arith.addi %0, %arg1 : i32
    %c0_i32 = arith.constant 0 : i32
    %c0_i32_0 = arith.constant 0 : i32
    return %1, %c0_i32 : i32, i32
  }
  func.func @transform_2(%arg0: i32, %arg1: i32) -> (i32, i32, i32) {
    %c0_i32 = arith.constant 0 : i32
    %c0_i32_0 = arith.constant 0 : i32
    %c0_i32_1 = arith.constant 0 : i32
    return %arg0, %c0_i32, %c0_i32_0 : i32, i32, i32
  }
}

</mosaic_0001>

<llo_original>
// kernel: tpu_custom_call.1
$region0: #{tpu_custom_call.1}
  #allocation0 [shape = 'u32[]', space=smem, size = 0x4, offset = 0x4, fixed_abs, tag = 'smem constant byte address 0x4 - core index']
  #allocation1 [shape = 'u32[144,128]{1,0:T(1,128)}', space=vmem, size = 0x12000, scoped, tag = 'internal scratch']
  %s0 = inlined_call_operand.hbm [shape: f32[16,128], index: 0, kind: input, shape index: {}]
  %s1 = inlined_call_operand.hbm [shape: f32[16,128], index: 1, kind: input, shape index: {}]
  %s2 = inlined_call_operand.hbm [shape: f32[2,32,128], index: 2, kind: output, shape index: {}]
  %s3 = sld [smem:[#allocation0]]
  $region53: #{tpu_custom_call.1} parent=0
    _
  %s5 = ssub.s32 1, %s3
  %s6 = scalar_select 0, %s5, %s3
  $region1: #{tpu_custom_call.1} parent=0
    #allocation2 [shape = 'u8[8192]{0}', space=vmem, size = 0x2000, scoped, tag = 'input window, operand 0']
    #allocation3 [shape = 's32[2]{0}', space=sflag, size = 0x8, scoped, tag = 'scoped memory for tpu_custom_call.1']
    #allocation4 [shape = 's32[2]{0}', space=sflag, size = 0x8, scoped, tag = 'scoped memory for tpu_custom_call.1']
    #allocation5 [shape = 'u8[8192]{0}', space=vmem, size = 0x2000, scoped, tag = 'input window, operand 1']
    #allocation6 [shape = 's32[2]{0}', space=sflag, size = 0x8, scoped, tag = 'scoped memory for tpu_custom_call.1']
    #allocation7 [shape = 'u8[32768]{0}', space=vmem, size = 0x8000, scoped, tag = 'output window, operand 0']
    %7 = vsyncpa [#allocation3], 0
    %s8 = scalar_lea.sflag [#allocation3], 1
    %9 = vsyncpa %s8, 0
    %10 = vsyncpa [#allocation6], 0
    %s11 = scalar_lea.sflag [#allocation6], 1
    %12 = vsyncpa %s11, 0
    %13 = vsyncpa [#allocation4], 0
    %s14 = scalar_lea.sflag [#allocation4], 1
    %15 = vsyncpa %s14, 0
    loop: start=0, step=1, limit=4
    $region2: #{tpu_custom_call.1} parent=1 // loop_pre_header
      _
    $region3: #{tpu_custom_call.1} parent=1 // loop_header
      %s17 = sphi 0, %s21
      %p18 = scmp.ge.s32.totalorder %s17, 4
      %s24 = sphi 0, %s36
      %s25 = sphi 0, %s32
      %s26 = sphi 0, %s24
      %s27 = sphi 0, %s25
      %s28 = sphi 0, %s26
      %s29 = sphi 0, %s27
      %s41 = sphi 0, %s43
      %s44 = sphi 0, %s41
      %s45 = sphi 0, %s44
      %s61 = sphi 0, %s45
      %s69 = sphi 0, %s71
      %s72 = sphi 0, %s69
      %s73 = sphi 0, %s72
      %s89 = sphi 0, %s73
      %s95 = sphi 0, %s97
      %s98 = sphi 0, %s95
      %s99 = sphi 0, %s98
      %s115 = sphi 0, %s99
    $region4: #{tpu_custom_call.1} parent=1 // loop_header_branch
      %20 = sbr.rel (%p18) target = $region8
    $region5: #{tpu_custom_call.1} parent=1 // loop_body
      %s22 = ssub.s32 %s17, 1
      %s23 = ssub.s32 %s17, 2
      %s30 = sadd.s32 1, %s25
      %p31 = scmp.ge.s32.totalorder %s30, 1
      %s32 = scalar_select %p31, 0, %s30
      %s33 = sadd.s32 1, %s24
      %s34 = scalar_select %p31, %s33, %s24
      %p35 = scmp.ge.s32.totalorder %s34, 2
      %s36 = scalar_select %p35, 0, %s34
      %s37 = sadd.s32 %s24, %s25
      %s38 = sadd.s32 %s36, %s32
      %s39 = ssub.s32 %s37, %s38
      %p40 = scmp.eq.s32.totalorder %s39, 0
      %s42 = sadd.s32 %s41, 1
      %s43 = scalar_select %p40, %s41, %s42
      %p46 = pneg %p40
      %p47 = scmp.eq.s32.totalorder %s17, 1
      %p48 = por %p46, %p47
      %p49 = scmp.ne.s32.totalorder %s41, %s44
      %p50 = scmp.eq.s32.totalorder %s17, 0
      %p51 = por %p49, %p50
      %p52 = scmp.ne.s32.totalorder %s41, %s44
      %p53 = scmp.eq.s32.totalorder %s22, 1
      %p54 = por %p52, %p53
      %p55 = scmp.ne.s32.totalorder %s44, %s45
      %p56 = scmp.eq.s32.totalorder %s22, 0
      %p57 = por %p55, %p56
      %p58 = scmp.ne.s32.totalorder %s44, %s45
      %p59 = scmp.eq.s32.totalorder %s23, 1
      %p60 = por %p58, %p59
      %p62 = scmp.ne.s32.totalorder %s45, %s61
      %p63 = scmp.eq.s32.totalorder %s23, 0
      %p64 = por %p62, %p63
      %s65 = sadd.s32 %s24, %s25
      %s66 = sadd.s32 %s36, %s32
      %s67 = ssub.s32 %s65, %s66
      %p68 = scmp.eq.s32.totalorder %s67, 0
      %s70 = sadd.s32 %s69, 1
      %s71 = scalar_select %p68, %s69, %s70
      %p74 = pneg %p68
      %p75 = scmp.eq.s32.totalorder %s17, 1
      %p76 = por %p74, %p75
      %p77 = scmp.ne.s32.totalorder %s69, %s72
      %p78 = scmp.eq.s32.totalorder %s17, 0
      %p79 = por %p77, %p78
      %p80 = scmp.ne.s32.totalorder %s69, %s72
      %p81 = scmp.eq.s32.totalorder %s22, 1
      %p82 = por %p80, %p81
      %p83 = scmp.ne.s32.totalorder %s72, %s73
      %p84 = scmp.eq.s32.totalorder %s22, 0
      %p85 = por %p83, %p84
      %p86 = scmp.ne.s32.totalorder %s72, %s73
      %p87 = scmp.eq.s32.totalorder %s23, 1
      %p88 = por %p86, %p87
      %p90 = scmp.ne.s32.totalorder %s73, %s89
      %p91 = scmp.eq.s32.totalorder %s23, 0
      %p92 = por %p90, %p91
      %s93 = ssub.s32 %s24, %s36
      %p94 = scmp.eq.s32.totalorder %s93, 0
      %s96 = sadd.s32 %s95, 1
      %s97 = scalar_select %p94, %s95, %s96
      %p100 = pneg %p94
      %p101 = scmp.eq.s32.totalorder %s17, 1
      %p102 = por %p100, %p101
      %p103 = scmp.ne.s32.totalorder %s95, %s98
      %p104 = scmp.eq.s32.totalorder %s17, 0
      %p105 = por %p103, %p104
      %p106 = scmp.ne.s32.totalorder %s95, %s98
      %p107 = scmp.eq.s32.totalorder %s22, 1
      %p108 = por %p106, %p107
      %p109 = scmp.ne.s32.totalorder %s98, %s99
      %p110 = scmp.eq.s32.totalorder %s22, 0
      %p111 = por %p109, %p110
      %p112 = scmp.ne.s32.totalorder %s98, %s99
      %p113 = scmp.eq.s32.totalorder %s23, 1
      %p114 = por %p112, %p113
      %p116 = scmp.ne.s32.totalorder %s99, %s115
      %p117 = scmp.eq.s32.totalorder %s23, 0
      %p118 = por %p116, %p117
      %p119 = scmp.le.s32.totalorder 1, %s17
      %p120 = scmp.lt.s32.totalorder %s17, 3
      %p121 = pnand %p119, %p120
      %p122 = pneg %p121
      // Predicated region
      $region9: #{tpu_custom_call.1} parent=5 // pred_check
        _
      $region10: #{tpu_custom_call.1} parent=5 // pred_check_branch
        %124 = sbr.rel (%p121) target = $region12
      $region11: #{tpu_custom_call.1} parent=5 // pred_region
        %s125 = ssub.s32 %s17, 1
      $region12: #{tpu_custom_call.1} parent=5 // pred_fallthru
        _
      %p126 = scmp.lt.s32.totalorder %s17, 2
      // Predicated region
      $region13: #{tpu_custom_call.1} parent=5 // pred_check
        %p127 = pneg %p126
      $region14: #{tpu_custom_call.1} parent=5 // pred_check_branch
        %129 = sbr.rel (%p127) target = $region16
      $region15: #{tpu_custom_call.1} parent=5 // pred_region
        // Predicated region
        $region17: #{tpu_custom_call.1} parent=15 // pred_check
          %p130 = pneg %p51
        $region18: #{tpu_custom_call.1} parent=15 // pred_check_branch
          %132 = sbr.rel (%p130) target = $region20
        $region19: #{tpu_custom_call.1} parent=15 // pred_region
          %s133 = sand.u32 %s41, 1
          %s134 = scalar_lea.sflag [#allocation3], %s133
          %s135 = sand.u32 %s41, 1
          %s136 = smul.addr %s135, 8
          %s137 = scalar_lea.vmem [#allocation2], %s136
          %s138 = sadd.s32 %s24, %s25
          %s140 = ssub.s32 128, 128
          %141 = vsyncadd %s134, %s140
          %s142 = smul.addr %s138, 128
          %s143 = scalar_lea.hbm %s0, %s142
          %s145 = sshll.u32 %s137, 4
          %s146 = int_to_ptr.vmem [resolvable:$true] %s145
          %148 = dma.hbm_to_vmem [thread:$0]  %s143, 128, %s146, %s134
        $region20: #{tpu_custom_call.1} parent=15 // pred_fallthru
          _
        // Predicated region
        $region21: #{tpu_custom_call.1} parent=15 // pred_check
          %p149 = pneg %p79
        $region22: #{tpu_custom_call.1} parent=15 // pred_check_branch
          %151 = sbr.rel (%p149) target = $region24
        $region23: #{tpu_custom_call.1} parent=15 // pred_region
          %s152 = sand.u32 %s69, 1
          %s153 = scalar_lea.sflag [#allocation6], %s152
          %s154 = sand.u32 %s69, 1
          %s155 = smul.addr %s154, 8
          %s156 = scalar_lea.vmem [#allocation5], %s155
          %s157 = sadd.s32 %s24, %s25
          %s159 = ssub.s32 128, 128
          %160 = vsyncadd %s153, %s159
          %s161 = smul.addr %s157, 128
          %s162 = scalar_lea.hbm %s1, %s161
          %s164 = sshll.u32 %s156, 4
          %s165 = int_to_ptr.vmem [resolvable:$true] %s164
          %167 = dma.hbm_to_vmem [thread:$0]  %s162, 128, %s165, %s153
        $region24: #{tpu_custom_call.1} parent=15 // pred_fallthru
          _
      $region16: #{tpu_custom_call.1} parent=5 // pred_fallthru
        _
      %p168 = scmp.le.s32.totalorder 1, %s17
      %p169 = scmp.lt.s32.totalorder %s17, 3
      %p170 = pnand %p168, %p169
      %p171 = pneg %p170
      // Predicated region
      $region25: #{tpu_custom_call.1} parent=5 // pred_check
        _
      $region26: #{tpu_custom_call.1} parent=5 // pred_check_branch
        %173 = sbr.rel (%p170) target = $region28
      $region27: #{tpu_custom_call.1} parent=5 // pred_region
        %s174 = ssub.s32 %s17, 1
        %s175 = sand.u32 %s44, 1
        %s176 = scalar_lea.sflag [#allocation3], %s175
        %s177 = sand.u32 %s44, 1
        %s178 = smul.addr %s177, 8
        %s179 = scalar_lea.vmem [#allocation2], %s178
        // Predicated region
        $region29: #{tpu_custom_call.1} parent=27 // pred_check
          %p180 = pneg %p57
        $region30: #{tpu_custom_call.1} parent=27 // pred_check_branch
          %182 = sbr.rel (%p180) target = $region32
        $region31: #{tpu_custom_call.1} parent=27 // pred_region
          %183 = dma.done %s176, 128
        $region32: #{tpu_custom_call.1} parent=27 // pred_fallthru
          _
        %s184 = sand.u32 %s72, 1
        %s185 = scalar_lea.sflag [#allocation6], %s184
        %s186 = sand.u32 %s72, 1
        %s187 = smul.addr %s186, 8
        %s188 = scalar_lea.vmem [#allocation5], %s187
        // Predicated region
        $region33: #{tpu_custom_call.1} parent=27 // pred_check
          %p189 = pneg %p85
        $region34: #{tpu_custom_call.1} parent=27 // pred_check_branch
          %191 = sbr.rel (%p189) target = $region36
        $region35: #{tpu_custom_call.1} parent=27 // pred_region
          %192 = dma.done %s185, 128
        $region36: #{tpu_custom_call.1} parent=27 // pred_fallthru
          _
        %s193 = sand.u32 %s44, 1
        %s194 = scalar_lea.sflag [#allocation3], %s193
        %s195 = sand.u32 %s44, 1
        %s196 = smul.addr %s195, 8
        %s197 = scalar_lea.vmem [#allocation2], %s196
        %p198 = pneg %p57
        %p199 = pneg %p54
        %s200 = sand.u32 %s72, 1
        %s201 = scalar_lea.sflag [#allocation6], %s200
        %s202 = sand.u32 %s72, 1
        %s203 = smul.addr %s202, 8
        %s204 = scalar_lea.vmem [#allocation5], %s203
        %p205 = pneg %p85
        %p206 = pneg %p82
        %p207 = pneg %p111
        %p208 = pneg %p108
        %s209 = sand.u32 %s98, 1
        %s210 = scalar_lea.sflag [#allocation4], %s209
        %s211 = sand.u32 %s98, 1
        %s212 = smul.addr %s211, 32
        %s213 = scalar_lea.vmem [#allocation7], %s212
        %s214 = sadd.s32 %s26, %s27
        %s215 = sadd.s32 %s26, %s27
        %p216 = scmp.eq.s32.totalorder %s27, 0
        // Predicated region
        $region37: #{tpu_custom_call.1} parent=27 // pred_check
          %p217 = pneg %p216
        $region38: #{tpu_custom_call.1} parent=27 // pred_check_branch
          %219 = sbr.rel (%p217) target = $region40
        $region39: #{tpu_custom_call.1} parent=27 // pred_region
          %220 = vst [vmem:[%s213] sm:$0xff] 0.0
          %221 = vst [vmem:[%s213 + $0x8] sm:$0xff] 0.0
          %222 = vst [vmem:[%s213 + $0x10] sm:$0xff] 0.0
          %223 = vst [vmem:[%s213 + $0x18] sm:$0xff] 0.0
        $region40: #{tpu_custom_call.1} parent=27 // pred_fallthru
          _
        %v224 = vld [vmem:[%s179] sm:$0xff]
        %v225 = vld [vmem:[%s188] sm:$0xff]
        %v226 = vxor.u32 %v224, 2147483648
        %v227 = vmul.f32 %v226, 1.442695
        %v228 = vpow.pop %v227
        %v229 = vadd.f32 %v228, 1.0
        %v230 = vrcp.pop %v229
        %v231 = vmul.f32 1.0, %v230
        %v232 = vsub.f32 1.0, %v225
        %v233 = vmul.f32 %v231, %v232
        %v234 = vsub.f32 0.0, %v231
        %v235 = vmul.f32 %v234, 1.442695
        %v236 = vpow.pop %v235
        %v237 = vadd.f32 %v236, 1.0
        %v238 = vlog2.pop %v237
        %v239 = vmul.f32 %v238, 0.6931472
        %v240 = vmul.f32 -0.5, %v236
        %v241 = vadd.f32 %v240, 1.0
        %v242 = vmul.f32 %v241, %v236
        %v243 = vand.u32 2147483647, %v236
        %vm244 = vcmp.lt.f32.partialorder %v243, 0.0004427343
        %v245 = vsel %vm244, %v242, %v239
        %v246 = vadd.f32 %v233, %v245
        %v247 = vmul.f32 %v231, %v225
        %v248 = vld [vmem:[%s213] sm:$0xff]
        %v249 = vadd.f32 %v246, 0.0
        %v250 = vadd.f32 %v248, %v249
        %251 = vst [vmem:[%s213] sm:$0xff] %v250
        %v252 = vld [vmem:[%s213 + $0x8] sm:$0xff]
        %v253 = vadd.f32 %v247, 0.0
        %v254 = vadd.f32 %v252, %v253
        %255 = vst [vmem:[%s213 + $0x8] sm:$0xff] %v254
        %v256 = vld [vmem:[%s213 + $0x10] sm:$0xff]
        %v257 = vadd.f32 %v231, 0.0
        %v258 = vadd.f32 %v256, %v257
        %259 = vst [vmem:[%s213 + $0x10] sm:$0xff] %v258
        %v260 = vld [vmem:[%s213 + $0x18] sm:$0xff]
        %v261 = vadd.f32 %v225, 0.0
        %v262 = vadd.f32 %v260, %v261
        %263 = vst [vmem:[%s213 + $0x18] sm:$0xff] %v262
        %s264 = sand.u32 %s98, 1
        %s265 = scalar_lea.sflag [#allocation4], %s264
        %s266 = sand.u32 %s98, 1
        %s267 = smul.addr %s266, 32
        %s268 = scalar_lea.vmem [#allocation7], %s267
        // Predicated region
        $region41: #{tpu_custom_call.1} parent=27 // pred_check
          %p269 = pneg %p108
        $region42: #{tpu_custom_call.1} parent=27 // pred_check_branch
          %271 = sbr.rel (%p269) target = $region44
        $region43: #{tpu_custom_call.1} parent=27 // pred_region
          %s273 = ssub.s32 512, 512
          %274 = vsyncadd %s265, %s273
          %s275 = smul.addr %s26, 4
          %s276 = smul.addr %s275, 128
          %s277 = scalar_lea.hbm %s2, %s276
          %s278 = sshll.u32 %s268, 4
          %s279 = int_to_ptr.vmem [resolvable:$true] %s278
          %284 = dma.vmem_to_hbm [thread:$0]  %s279, 512, %s277, %s265, 128, 128, 8
        $region44: #{tpu_custom_call.1} parent=27 // pred_fallthru
          _
      $region28: #{tpu_custom_call.1} parent=5 // pred_fallthru
        _
      %p285 = scmp.le.s32.totalorder 2, %s17
      // Predicated region
      $region45: #{tpu_custom_call.1} parent=5 // pred_check
        %p286 = pneg %p285
      $region46: #{tpu_custom_call.1} parent=5 // pred_check_branch
        %288 = sbr.rel (%p286) target = $region48
      $region47: #{tpu_custom_call.1} parent=5 // pred_region
        %s289 = ssub.s32 %s17, 2
        // Predicated region
        $region49: #{tpu_custom_call.1} parent=47 // pred_check
          %p290 = pneg %p114
        $region50: #{tpu_custom_call.1} parent=47 // pred_check_branch
          %292 = sbr.rel (%p290) target = $region52
        $region51: #{tpu_custom_call.1} parent=47 // pred_region
          %s293 = sand.u32 %s99, 1
          %s294 = scalar_lea.sflag [#allocation4], %s293
          %s295 = sand.u32 %s99, 1
          %s296 = smul.addr %s295, 32
          %s297 = scalar_lea.vmem [#allocation7], %s296
          %298 = dma.done %s294, 512
        $region52: #{tpu_custom_call.1} parent=47 // pred_fallthru
          _
      $region48: #{tpu_custom_call.1} parent=5 // pred_fallthru
        _
    $region6: #{tpu_custom_call.1} parent=1 // loop_footer
      %s21 = sadd.s32 1, %s17
    $region7: #{tpu_custom_call.1} parent=1 // loop_footer_branch
      %16 = sbr.rel target = $region3
    $region8: #{tpu_custom_call.1} parent=1 // loop_exit
      _
    %299 = vsyncpa [#allocation3], 1
    %s300 = scalar_lea.sflag [#allocation3], 1
    %301 = vsyncpa %s300, 1
    %302 = vsyncpa [#allocation6], 1
    %s303 = scalar_lea.sflag [#allocation6], 1
    %304 = vsyncpa %s303, 1
    %305 = vsyncpa [#allocation4], 1
    %s306 = scalar_lea.sflag [#allocation4], 1
    %307 = vsyncpa %s306, 1

</llo_original>
